<compile_context>
chip_gen: v5e
topology: v5e:2x2
jax: 0.10.0
libtpu: 0.0.40
codegen_flags: <defaults>
</compile_context>

<pallas_src>
import jax
import jax.numpy as jnp
import numpy as np
from jax.experimental import pallas as pl
from jax.experimental.pallas import tpu as pltpu


def _round_up(x, m):
    return ((x + m - 1) // m) * m


def _cdiv(a, b):
    return (a + b - 1) // b


def _normalize_scale_meta_kernel(scale_ref, meta_ref, o_ref):
    """Row-L2-normalize a (TM, D) meta tile (f32) and fold in exp(logit_scale).

    Output is written in bf16 so the matmul stage runs on the bf16-native MXU.
    """
    meta = meta_ref[...].astype(jnp.float32)
    sq = jnp.sum(meta * meta, axis=1, keepdims=True)
    # rsqrt(max(sq, eps^2)) == 1 / max(||row||_2, eps), eps = 1e-12 (one EUP op).
    inv = jax.lax.rsqrt(jnp.maximum(sq, 1e-24))
    scale = jnp.exp(scale_ref[0])
    o_ref[...] = (meta * (inv * scale)).astype(o_ref.dtype)


def _matmul_kernel(x_ref, w_ref, o_ref):
    """Tiled logits = x @ w.T with w already normalized+scaled (bf16 in, f32 out).

    Grid = (N, M, K); the output block index is invariant along K, so the f32
    output tile stays VMEM-resident across the reduction and we accumulate
    into it directly (no scratch).
    """
    @pl.when(pl.program_id(2) == 0)
    def _():
        o_ref[...] = jnp.zeros_like(o_ref)

    # Contract over the last dim of both operands -> no transpose of w needed.
    o_ref[...] += jax.lax.dot_general(
        x_ref[...], w_ref[...],
        dimension_numbers=(((1,), (1,)), ((), ())),
        preferred_element_type=jnp.float32)


def d_forward(x, meta, logit_scale, *, tn=512, tm=512, tk=1024):
    """Pallas implementation of D.forward.

    x:           (N, D) float32
    meta:        (M, D) float32
    logit_scale: ()     float32 raw parameter (exp is taken inside the kernel)
    returns:     (N, M) float32
    """
    N, D = x.shape
    M, Dm = meta.shape
    assert D == Dm

    # Adaptive tiles for small shapes.  bf16 minimum tile is (16, 128):
    # N (sublane) rounds to 16, M/D (lane-dense dims) round to 128.
    tn = min(tn, _round_up(N, 16))
    tm = min(tm, _round_up(M, 128))
    tk = min(tk, _round_up(D, 128))

    # v7x has 2 TensorCores: make sure the parallel (N, M) grid has >= 2 tiles
    # when the problem is big enough, so the second core is not idle.
    if _cdiv(N, tn) * _cdiv(M, tm) < 2:
        if tm > 128 and _round_up(M, 128) > 128:
            tm = _round_up(_round_up(M, 128) // 2, 128)
        elif tn > 16 and _round_up(N, 16) > 16:
            tn = _round_up(_round_up(N, 16) // 2, 16)

    Np, Mp, Dp = _round_up(N, tn), _round_up(M, tm), _round_up(D, tk)

    # Fused pad + cast of x to bf16 (single materialization, no extra f32 copy).
    x = x.astype(jnp.float32)
    if (Np, Dp) != (N, D):
        x_p = jnp.zeros((Np, Dp), jnp.bfloat16).at[:N, :D].set(
            x.astype(jnp.bfloat16))
    else:
        x_p = x.astype(jnp.bfloat16)

    meta = meta.astype(jnp.float32)
    if (Mp, Dp) != (M, D):
        meta_p = jnp.zeros((Mp, Dp), jnp.float32).at[:M, :D].set(meta)
    else:
        meta_p = meta

    scale = jnp.reshape(logit_scale.astype(jnp.float32), (1,))

    # --- Stage 1: normalize + scale meta rows once (f32 math, bf16 store) ---
    # Row tile covers the full feature dim; shrink it when D is large so the
    # (tile, Dp) f32-in / bf16-out double-buffered block stays well under the
    # scoped-VMEM budget (v7x has only 64 MiB physical VMEM).
    tm_norm = tm
    bytes_per_row = Dp * (4 + 2) * 2          # f32 in + bf16 out, double-buffered
    vmem_budget = 8 * 1024 * 1024
    while tm_norm % 2 == 0 and tm_norm // 2 >= 128 and tm_norm * bytes_per_row > vmem_budget:
        tm_norm //= 2

    w = pl.pallas_call(
        _normalize_scale_meta_kernel,
        out_shape=jax.ShapeDtypeStruct((Mp, Dp), jnp.bfloat16),
        grid=(Mp // tm_norm,),
        in_specs=[
            pl.BlockSpec(memory_space=pltpu.SMEM),                # logit_scale
            pl.BlockSpec((tm_norm, Dp), lambda j: (j, 0)),        # meta tile
        ],
        out_specs=pl.BlockSpec((tm_norm, Dp), lambda j: (j, 0)),
        compiler_params=pltpu.CompilerParams(
            dimension_semantics=("arbitrary",)),
    )(scale, meta_p)

    # --- Stage 2: tiled matmul  logits = x @ w.T  (bf16 in, f32 accumulate) ---
    cost = pl.CostEstimate(
        flops=2 * Np * Mp * Dp,
        transcendentals=0,
        bytes_accessed=Np * Dp * 2 + Mp * Dp * 2 + Np * Mp * 4)

    out_p = pl.pallas_call(
        _matmul_kernel,
        out_shape=jax.ShapeDtypeStruct((Np, Mp), jnp.float32),
        grid_spec=pltpu.PrefetchScalarGridSpec(
            num_scalar_prefetch=0,
            grid=(Np // tn, Mp // tm, Dp // tk),
            in_specs=[
                pl.BlockSpec((tn, tk), lambda i, j, k: (i, k)),   # x  (bf16)
                pl.BlockSpec((tm, tk), lambda i, j, k: (j, k)),   # w  (bf16)
            ],
            out_specs=pl.BlockSpec((tn, tm), lambda i, j, k: (i, j)),
        ),
        compiler_params=pltpu.CompilerParams(
            dimension_semantics=("parallel", "parallel", "arbitrary")),
        cost_estimate=cost,
    )(x_p, w)

    return out_p[:N, :M]


def d_reference(x, meta, logit_scale):
    """Pure-JAX reference matching the PyTorch module (full f32)."""
    norm = jnp.sqrt(jnp.sum(meta * meta, axis=1, keepdims=True))
    meta_n = meta / jnp.maximum(norm, 1e-12)
    return jnp.exp(logit_scale) * (x @ meta_n.T)


if __name__ == "__main__":
    key = jax.random.PRNGKey(0)
    kx, km = jax.random.split(key)

    N, M, D = 8, 16, 32
    x = jax.random.normal(kx, (N, D), dtype=jnp.float32)
    meta = jax.random.normal(km, (M, D), dtype=jnp.float32)

    # Deterministic parameter init, same as the module: log(1 / 0.07)
    logit_scale = jnp.asarray(np.log(1.0 / 0.07), dtype=jnp.float32)

    out = d_forward(x, meta, logit_scale)
    out = jax.block_until_ready(out)

    ref = d_reference(x, meta, logit_scale)
    # bf16 MXU inputs with f32 accumulation -> a few units-in-last-place of
    # bf16 error on ~O(10) magnitude logits.
    np.testing.assert_allclose(np.asarray(out), np.asarray(ref),
                               rtol=2e-2, atol=1e-1)

    print("KERNEL_OK")
</pallas_src>

<mosaic_0001>
module attributes {stable_mosaic.version = 11 : i64} {
  func.func @_normalize_scale_meta_kernel(%arg0: i32, %arg1: memref<1xf32, #tpu.memory_space<smem>>, %arg2: memref<128x128xf32, #tpu.memory_space<vmem>>, %arg3: memref<128x128xbf16, #tpu.memory_space<vmem>>) attributes {dimension_semantics = [#tpu.dimension_semantics<arbitrary>], iteration_bounds = array<i64: 1>, scalar_prefetch = 0 : i64, scratch_operands = 0 : i64, tpu.core_type = #tpu.core_type<tc>, window_params = [{transform_indices = @transform_0, window_bounds = array<i64: 1>}, {transform_indices = @transform_1, window_bounds = array<i64: 128, 128>}, {transform_indices = @transform_2, window_bounds = array<i64: 128, 128>}]} {
    %c0 = arith.constant 0 : index
    %c0_0 = arith.constant 0 : index
    %0 = vector.load %arg2[%c0, %c0_0] : memref<128x128xf32, #tpu.memory_space<vmem>>, vector<128x128xf32>
    %1 = arith.mulf %0, %0 : vector<128x128xf32>
    %cst = arith.constant dense<0.000000e+00> : vector<128xf32>
    %2 = vector.multi_reduction <add>, %1, %cst [1] : vector<128x128xf32> to vector<128xf32>
    %3 = vector.shape_cast %2 : vector<128xf32> to vector<128x1xf32>
    %cst_1 = arith.constant 1.000000e-24 : f32
    %4 = vector.broadcast %cst_1 : f32 to vector<128x1xf32>
    %5 = arith.maximumf %3, %4 : vector<128x1xf32>
    %6 = math.rsqrt %5 : vector<128x1xf32>
    %c0_2 = arith.constant 0 : index
    %7 = memref.load %arg1[%c0_2] : memref<1xf32, #tpu.memory_space<smem>>
    %8 = math.exp %7 : f32
    %9 = vector.broadcast %8 : f32 to vector<128x1xf32>
    %10 = arith.mulf %6, %9 : vector<128x1xf32>
    %11 = vector.broadcast %10 : vector<128x1xf32> to vector<128x128xf32>
    %12 = arith.mulf %0, %11 : vector<128x128xf32>
    %13 = arith.truncf %12 : vector<128x128xf32> to vector<128x128xbf16>
    %c0_3 = arith.constant 0 : index
    %c0_4 = arith.constant 0 : index
    %14 = vector.load %arg3[%c0_3, %c0_4] : memref<128x128xbf16, #tpu.memory_space<vmem>>, vector<128x128xbf16>
    tpu.vector_store %arg3[%c0_3, %c0_4], %13 {strides = array<i32>} : memref<128x128xbf16, #tpu.memory_space<vmem>>, vector<128x128xbf16>,
    return
  }
  func.func @transform_0(%arg0: i32) -> i32 {
    %c0_i32 = arith.constant 0 : i32
    %c0_i32_0 = arith.constant 0 : i32
    return %c0_i32 : i32
  }
  func.func @transform_1(%arg0: i32) -> (i32, i32) {
    %c0_i32 = arith.constant 0 : i32
    %c0_i32_0 = arith.constant 0 : i32
    return %arg0, %c0_i32 : i32, i32
  }
  func.func @transform_2(%arg0: i32) -> (i32, i32) {
    %c0_i32 = arith.constant 0 : i32
    %c0_i32_0 = arith.constant 0 : i32
    return %arg0, %c0_i32 : i32, i32
  }
}

</mosaic_0001>

<llo_original>
// kernel: tpu_custom_call.1
$region0: #{tpu_custom_call.1}
  #allocation0 [shape = 'u32[]', space=smem, size = 0x4, offset = 0x4, fixed_abs, tag = 'smem constant byte address 0x4 - core index']
  #allocation1 [shape = 'u32[72,128]{1,0:T(1,128)}', space=vmem, size = 0x9000, scoped, tag = 'internal scratch']
  #allocation2 [shape = 'f32[1]{0:T(128)S(6)}', space=smem, size = 0x200, scoped, tag = 'scoped memory for tpu_custom_call.1']
  %s0 = inlined_call_operand.<no memory space> [shape: f32[1], index: 0, kind: input, shape index: {}]
  %s1 = inlined_call_operand.hbm [shape: f32[128,128], index: 1, kind: input, shape index: {}]
  %s2 = inlined_call_operand.hbm [shape: bf16[128,128], index: 2, kind: output, shape index: {}]
  %s3 = sld [smem:[#allocation0]]
  $region22: #{tpu_custom_call.1} parent=0
    _
  %s5 = ssub.s32 1, %s3
  %s6 = scalar_select 0, %s5, %s3
  %7 = sst [smem:[#allocation2]] %s0
  $region1: #{tpu_custom_call.1} parent=0
    #allocation3 [shape = 'u8[65536]{0}', space=vmem, size = 0x10000, scoped, tag = 'input window, operand 1, single buffered']
    #allocation4 [shape = 's32[1]{0}', space=sflag, size = 0x4, scoped, tag = 'scoped memory for tpu_custom_call.1']
    #allocation5 [shape = 's32[1]{0}', space=sflag, size = 0x4, scoped, tag = 'scoped memory for tpu_custom_call.1']
    #allocation6 [shape = 'u8[32768]{0}', space=vmem, size = 0x8000, scoped, tag = 'output window, operand 0, single buffered']
    %8 = vsyncpa [#allocation4], 0
    %9 = vsyncpa [#allocation5], 0
    // Predicated region
    $region2: #{tpu_custom_call.1} parent=1 // pred_check
      _
    $region3: #{tpu_custom_call.1} parent=1 // pred_check_branch
      %11 = sbr.rel (0) target = $region5
    $region4: #{tpu_custom_call.1} parent=1 // pred_region
      _
    $region5: #{tpu_custom_call.1} parent=1 // pred_fallthru
      _
    // Predicated region
    $region6: #{tpu_custom_call.1} parent=1 // pred_check
      _
    $region7: #{tpu_custom_call.1} parent=1 // pred_check_branch
      %13 = sbr.rel (0) target = $region9
    $region8: #{tpu_custom_call.1} parent=1 // pred_region
      %15 = vsyncadd [#allocation4], 0
      %s16 = sshll.u32 %s1, 4
      %s17 = int_to_ptr.hbm [resolvable:$true] %s16
      %s18 = sshll.u32 [#allocation3], 4
      %s19 = int_to_ptr.vmem [resolvable:$true] %s18
      %24 = dma.hbm_to_vmem [thread:$0]  %s17, 2048, %s19, [#allocation4], 128, 128, 8
    $region9: #{tpu_custom_call.1} parent=1 // pred_fallthru
      _
    // Predicated region
    $region10: #{tpu_custom_call.1} parent=1 // pred_check
      _
    $region11: #{tpu_custom_call.1} parent=1 // pred_check_branch
      %26 = sbr.rel (0) target = $region13
    $region12: #{tpu_custom_call.1} parent=1 // pred_region
      %28 = dma.done [#allocation4], 2048
    $region13: #{tpu_custom_call.1} parent=1 // pred_fallthru
      _
    %v29 = vld [vmem:[#allocation3] sm:$0xff]
    %v30 = vld [vmem:[#allocation3 + $0x8] sm:$0xff]
    %v31 = vld [vmem:[#allocation3 + $0x10] sm:$0xff]
    %v32 = vld [vmem:[#allocation3 + $0x18] sm:$0xff]
    %v33 = vld [vmem:[#allocation3 + $0x20] sm:$0xff]
    %v34 = vld [vmem:[#allocation3 + $0x28] sm:$0xff]
    %v35 = vld [vmem:[#allocation3 + $0x30] sm:$0xff]
    %v36 = vld [vmem:[#allocation3 + $0x38] sm:$0xff]
    %v37 = vld [vmem:[#allocation3 + $0x40] sm:$0xff]
    %v38 = vld [vmem:[#allocation3 + $0x48] sm:$0xff]
    %v39 = vld [vmem:[#allocation3 + $0x50] sm:$0xff]
    %v40 = vld [vmem:[#allocation3 + $0x58] sm:$0xff]
    %v41 = vld [vmem:[#allocation3 + $0x60] sm:$0xff]
    %v42 = vld [vmem:[#allocation3 + $0x68] sm:$0xff]
    %v43 = vld [vmem:[#allocation3 + $0x70] sm:$0xff]
    %v44 = vld [vmem:[#allocation3 + $0x78] sm:$0xff]
    %v45 = vmul.f32 %v29, %v29
    %v46 = vmul.f32 %v30, %v30
    %v47 = vmul.f32 %v31, %v31
    %v48 = vmul.f32 %v32, %v32
    %v49 = vmul.f32 %v33, %v33
    %v50 = vmul.f32 %v34, %v34
    %v51 = vmul.f32 %v35, %v35
    %v52 = vmul.f32 %v36, %v36
    %v53 = vmul.f32 %v37, %v37
    %v54 = vmul.f32 %v38, %v38
    %v55 = vmul.f32 %v39, %v39
    %v56 = vmul.f32 %v40, %v40
    %v57 = vmul.f32 %v41, %v41
    %v58 = vmul.f32 %v42, %v42
    %v59 = vmul.f32 %v43, %v43
    %v60 = vmul.f32 %v44, %v44
    %61 = vadd.xlane.f32.xlu0 %v45
    %v62 = vpop.xlane.xlu0 %61
    %63 = vadd.xlane.f32.xlu0 %v46
    %v64 = vpop.xlane.xlu0 %63
    %65 = vadd.xlane.f32.xlu0 %v47
    %v66 = vpop.xlane.xlu0 %65
    %67 = vadd.xlane.f32.xlu0 %v48
    %v68 = vpop.xlane.xlu0 %67
    %69 = vadd.xlane.f32.xlu0 %v49
    %v70 = vpop.xlane.xlu0 %69
    %71 = vadd.xlane.f32.xlu0 %v50
    %v72 = vpop.xlane.xlu0 %71
    %73 = vadd.xlane.f32.xlu0 %v51
    %v74 = vpop.xlane.xlu0 %73
    %75 = vadd.xlane.f32.xlu0 %v52
    %v76 = vpop.xlane.xlu0 %75
    %77 = vadd.xlane.f32.xlu0 %v53
    %v78 = vpop.xlane.xlu0 %77
    %79 = vadd.xlane.f32.xlu0 %v54
    %v80 = vpop.xlane.xlu0 %79
    %81 = vadd.xlane.f32.xlu0 %v55
    %v82 = vpop.xlane.xlu0 %81
    %83 = vadd.xlane.f32.xlu0 %v56
    %v84 = vpop.xlane.xlu0 %83
    %85 = vadd.xlane.f32.xlu0 %v57
    %v86 = vpop.xlane.xlu0 %85
    %87 = vadd.xlane.f32.xlu0 %v58
    %v88 = vpop.xlane.xlu0 %87
    %89 = vadd.xlane.f32.xlu0 %v59
    %v90 = vpop.xlane.xlu0 %89
    %91 = vadd.xlane.f32.xlu0 %v60
    %v92 = vpop.xlane.xlu0 %91
    %v93 = vmax.f32 %v62, 1e-24
    %v94 = vmax.f32 %v64, 1e-24
    %v95 = vmax.f32 %v66, 1e-24
    %v96 = vmax.f32 %v68, 1e-24
    %v97 = vmax.f32 %v70, 1e-24
    %v98 = vmax.f32 %v72, 1e-24
    %v99 = vmax.f32 %v74, 1e-24
    %v100 = vmax.f32 %v76, 1e-24
    %v101 = vmax.f32 %v78, 1e-24
    %v102 = vmax.f32 %v80, 1e-24
    %v103 = vmax.f32 %v82, 1e-24
    %v104 = vmax.f32 %v84, 1e-24
    %v105 = vmax.f32 %v86, 1e-24
    %v106 = vmax.f32 %v88, 1e-24
    %v107 = vmax.f32 %v90, 1e-24
    %v108 = vmax.f32 %v92, 1e-24
    %v109 = vrsqrt.pop %v93
    %v110 = vmul.f32 %v109, %v93
    %v111 = vmul.f32 %v110, %v109
    %v112 = vmul.f32 0.5, %v111
    %v113 = vsub.f32 1.5, %v112
    %v114 = vmul.f32 %v109, %v113
    %vm115 = vweird.f32 %v93
    %vm116 = vweird.f32 %v109
    %vm117 = vmor %vm115, %vm116
    %v118 = vsel %vm117, %v109, %v114
    %v119 = vrsqrt.pop %v94
    %v120 = vmul.f32 %v119, %v94
    %v121 = vmul.f32 %v120, %v119
    %v122 = vmul.f32 0.5, %v121
    %v123 = vsub.f32 1.5, %v122
    %v124 = vmul.f32 %v119, %v123
    %vm125 = vweird.f32 %v94
    %vm126 = vweird.f32 %v119
    %vm127 = vmor %vm125, %vm126
    %v128 = vsel %vm127, %v119, %v124
    %v129 = vrsqrt.pop %v95
    %v130 = vmul.f32 %v129, %v95
    %v131 = vmul.f32 %v130, %v129
    %v132 = vmul.f32 0.5, %v131
    %v133 = vsub.f32 1.5, %v132
    %v134 = vmul.f32 %v129, %v133
    %vm135 = vweird.f32 %v95
    %vm136 = vweird.f32 %v129
    %vm137 = vmor %vm135, %vm136
    %v138 = vsel %vm137, %v129, %v134
    %v139 = vrsqrt.pop %v96
    %v140 = vmul.f32 %v139, %v96
    %v141 = vmul.f32 %v140, %v139
    %v142 = vmul.f32 0.5, %v141
    %v143 = vsub.f32 1.5, %v142
    %v144 = vmul.f32 %v139, %v143
    %vm145 = vweird.f32 %v96
    %vm146 = vweird.f32 %v139
    %vm147 = vmor %vm145, %vm146
    %v148 = vsel %vm147, %v139, %v144
    %v149 = vrsqrt.pop %v97
    %v150 = vmul.f32 %v149, %v97
    %v151 = vmul.f32 %v150, %v149
    %v152 = vmul.f32 0.5, %v151
    %v153 = vsub.f32 1.5, %v152
    %v154 = vmul.f32 %v149, %v153
    %vm155 = vweird.f32 %v97
    %vm156 = vweird.f32 %v149
    %vm157 = vmor %vm155, %vm156
    %v158 = vsel %vm157, %v149, %v154
    %v159 = vrsqrt.pop %v98
    %v160 = vmul.f32 %v159, %v98
    %v161 = vmul.f32 %v160, %v159
    %v162 = vmul.f32 0.5, %v161
    %v163 = vsub.f32 1.5, %v162
    %v164 = vmul.f32 %v159, %v163
    %vm165 = vweird.f32 %v98
    %vm166 = vweird.f32 %v159
    %vm167 = vmor %vm165, %vm166
    %v168 = vsel %vm167, %v159, %v164
    %v169 = vrsqrt.pop %v99
    %v170 = vmul.f32 %v169, %v99
    %v171 = vmul.f32 %v170, %v169
    %v172 = vmul.f32 0.5, %v171
    %v173 = vsub.f32 1.5, %v172
    %v174 = vmul.f32 %v169, %v173
    %vm175 = vweird.f32 %v99
    %vm176 = vweird.f32 %v169
    %vm177 = vmor %vm175, %vm176
    %v178 = vsel %vm177, %v169, %v174
    %v179 = vrsqrt.pop %v100
    %v180 = vmul.f32 %v179, %v100
    %v181 = vmul.f32 %v180, %v179
    %v182 = vmul.f32 0.5, %v181
    %v183 = vsub.f32 1.5, %v182
    %v184 = vmul.f32 %v179, %v183
    %vm185 = vweird.f32 %v100
    %vm186 = vweird.f32 %v179
    %vm187 = vmor %vm185, %vm186
    %v188 = vsel %vm187, %v179, %v184
    %v189 = vrsqrt.pop %v101
    %v190 = vmul.f32 %v189, %v101
    %v191 = vmul.f32 %v190, %v189
    %v192 = vmul.f32 0.5, %v191
    %v193 = vsub.f32 1.5, %v192
    %v194 = vmul.f32 %v189, %v193
    %vm195 = vweird.f32 %v101
    %vm196 = vweird.f32 %v189
    %vm197 = vmor %vm195, %vm196
    %v198 = vsel %vm197, %v189, %v194
    %v199 = vrsqrt.pop %v102
    %v200 = vmul.f32 %v199, %v102
    %v201 = vmul.f32 %v200, %v199
    %v202 = vmul.f32 0.5, %v201
    %v203 = vsub.f32 1.5, %v202
    %v204 = vmul.f32 %v199, %v203
    %vm205 = vweird.f32 %v102
    %vm206 = vweird.f32 %v199
    %vm207 = vmor %vm205, %vm206
    %v208 = vsel %vm207, %v199, %v204
    %v209 = vrsqrt.pop %v103
    %v210 = vmul.f32 %v209, %v103
    %v211 = vmul.f32 %v210, %v209
    %v212 = vmul.f32 0.5, %v211
    %v213 = vsub.f32 1.5, %v212
    %v214 = vmul.f32 %v209, %v213
    %vm215 = vweird.f32 %v103
    %vm216 = vweird.f32 %v209
    %vm217 = vmor %vm215, %vm216
    %v218 = vsel %vm217, %v209, %v214
    %v219 = vrsqrt.pop %v104
    %v220 = vmul.f32 %v219, %v104
    %v221 = vmul.f32 %v220, %v219
    %v222 = vmul.f32 0.5, %v221
    %v223 = vsub.f32 1.5, %v222
    %v224 = vmul.f32 %v219, %v223
    %vm225 = vweird.f32 %v104
    %vm226 = vweird.f32 %v219
    %vm227 = vmor %vm225, %vm226
    %v228 = vsel %vm227, %v219, %v224
    %v229 = vrsqrt.pop %v105
    %v230 = vmul.f32 %v229, %v105
    %v231 = vmul.f32 %v230, %v229
    %v232 = vmul.f32 0.5, %v231
    %v233 = vsub.f32 1.5, %v232
    %v234 = vmul.f32 %v229, %v233
    %vm235 = vweird.f32 %v105
    %vm236 = vweird.f32 %v229
    %vm237 = vmor %vm235, %vm236
    %v238 = vsel %vm237, %v229, %v234
    %v239 = vrsqrt.pop %v106
    %v240 = vmul.f32 %v239, %v106
    %v241 = vmul.f32 %v240, %v239
    %v242 = vmul.f32 0.5, %v241
    %v243 = vsub.f32 1.5, %v242
    %v244 = vmul.f32 %v239, %v243
    %vm245 = vweird.f32 %v106
    %vm246 = vweird.f32 %v239
    %vm247 = vmor %vm245, %vm246
    %v248 = vsel %vm247, %v239, %v244
    %v249 = vrsqrt.pop %v107
    %v250 = vmul.f32 %v249, %v107
    %v251 = vmul.f32 %v250, %v249
    %v252 = vmul.f32 0.5, %v251
    %v253 = vsub.f32 1.5, %v252
    %v254 = vmul.f32 %v249, %v253
    %vm255 = vweird.f32 %v107
    %vm256 = vweird.f32 %v249
    %vm257 = vmor %vm255, %vm256
    %v258 = vsel %vm257, %v249, %v254
    %v259 = vrsqrt.pop %v108
    %v260 = vmul.f32 %v259, %v108
    %v261 = vmul.f32 %v260, %v259
    %v262 = vmul.f32 0.5, %v261
    %v263 = vsub.f32 1.5, %v262
    %v264 = vmul.f32 %v259, %v263
    %vm265 = vweird.f32 %v108
    %vm266 = vweird.f32 %v259
    %vm267 = vmor %vm265, %vm266
    %v268 = vsel %vm267, %v259, %v264
    %s269 = sld [smem:[#allocation2]]
    %v270 = vstv %s269
    %v271 = vmul.f32 %v270, 1.442695
    %v272 = vpow.pop %v271
    %s273 = vtos %v272
    %v274 = vstv %s273
    %v275 = vmul.f32 %v118, %v274
    %v276 = vmul.f32 %v128, %v274
    %v277 = vmul.f32 %v138, %v274
    %v278 = vmul.f32 %v148, %v274
    %v279 = vmul.f32 %v158, %v274
    %v280 = vmul.f32 %v168, %v274
    %v281 = vmul.f32 %v178, %v274
    %v282 = vmul.f32 %v188, %v274
    %v283 = vmul.f32 %v198, %v274
    %v284 = vmul.f32 %v208, %v274
    %v285 = vmul.f32 %v218, %v274
    %v286 = vmul.f32 %v228, %v274
    %v287 = vmul.f32 %v238, %v274
    %v288 = vmul.f32 %v248, %v274
    %v289 = vmul.f32 %v258, %v274
    %v290 = vmul.f32 %v268, %v274
    %v291 = vmul.f32 %v29, %v275
    %v292 = vmul.f32 %v30, %v276
    %v293 = vmul.f32 %v31, %v277
    %v294 = vmul.f32 %v32, %v278
    %v295 = vmul.f32 %v33, %v279
    %v296 = vmul.f32 %v34, %v280
    %v297 = vmul.f32 %v35, %v281
    %v298 = vmul.f32 %v36, %v282
    %v299 = vmul.f32 %v37, %v283
    %v300 = vmul.f32 %v38, %v284
    %v301 = vmul.f32 %v39, %v285
    %v302 = vmul.f32 %v40, %v286
    %v303 = vmul.f32 %v41, %v287
    %v304 = vmul.f32 %v42, %v288
    %v305 = vmul.f32 %v43, %v289
    %v306 = vmul.f32 %v44, %v290
    %v307 = vpack.c.bf16 %v291, %v291
    %v308 = vpack.c.bf16 %v292, %v292
    %v309 = vpack.c.bf16 %v293, %v293
    %v310 = vpack.c.bf16 %v294, %v294
    %v311 = vpack.c.bf16 %v295, %v295
    %v312 = vpack.c.bf16 %v296, %v296
    %v313 = vpack.c.bf16 %v297, %v297
    %v314 = vpack.c.bf16 %v298, %v298
    %v315 = vpack.c.bf16 %v299, %v299
    %v316 = vpack.c.bf16 %v300, %v300
    %v317 = vpack.c.bf16 %v301, %v301
    %v318 = vpack.c.bf16 %v302, %v302
    %v319 = vpack.c.bf16 %v303, %v303
    %v320 = vpack.c.bf16 %v304, %v304
    %v321 = vpack.c.bf16 %v305, %v305
    %v322 = vpack.c.bf16 %v306, %v306
    %323 = vst [vmem:[#allocation6] sm:$0xf] %v307
    %324 = vst [vmem:[#allocation6 + $0x4] sm:$0xf] %v308
    %325 = vst [vmem:[#allocation6 + $0x8] sm:$0xf] %v309
    %326 = vst [vmem:[#allocation6 + $0xc] sm:$0xf] %v310
    %327 = vst [vmem:[#allocation6 + $0x10] sm:$0xf] %v311
    %328 = vst [vmem:[#allocation6 + $0x14] sm:$0xf] %v312
    %329 = vst [vmem:[#allocation6 + $0x18] sm:$0xf] %v313
    %330 = vst [vmem:[#allocation6 + $0x1c] sm:$0xf] %v314
    %331 = vst [vmem:[#allocation6 + $0x20] sm:$0xf] %v315
    %332 = vst [vmem:[#allocation6 + $0x24] sm:$0xf] %v316
    %333 = vst [vmem:[#allocation6 + $0x28] sm:$0xf] %v317
    %334 = vst [vmem:[#allocation6 + $0x2c] sm:$0xf] %v318
    %335 = vst [vmem:[#allocation6 + $0x30] sm:$0xf] %v319
    %336 = vst [vmem:[#allocation6 + $0x34] sm:$0xf] %v320
    %337 = vst [vmem:[#allocation6 + $0x38] sm:$0xf] %v321
    %338 = vst [vmem:[#allocation6 + $0x3c] sm:$0xf] %v322
    // Predicated region
    $region14: #{tpu_custom_call.1} parent=1 // pred_check
      _
    $region15: #{tpu_custom_call.1} parent=1 // pred_check_branch
      %340 = sbr.rel (0) target = $region17
    $region16: #{tpu_custom_call.1} parent=1 // pred_region
      %342 = vsyncadd [#allocation5], 0
      %s343 = sshll.u32 [#allocation6], 4
      %s344 = int_to_ptr.vmem [resolvable:$true] %s343
      %s345 = sshll.u32 %s2, 4
      %s346 = int_to_ptr.hbm [resolvable:$true] %s345
      %351 = dma.vmem_to_hbm [thread:$0]  %s344, 1024, %s346, [#allocation5], 64, 64, 4
    $region17: #{tpu_custom_call.1} parent=1 // pred_fallthru
      _
    // Predicated region
    $region18: #{tpu_custom_call.1} parent=1 // pred_check
      _
    $region19: #{tpu_custom_call.1} parent=1 // pred_check_branch
      %353 = sbr.rel (0) target = $region21
    $region20: #{tpu_custom_call.1} parent=1 // pred_region
      %355 = dma.done [#allocation5], 1024
    $region21: #{tpu_custom_call.1} parent=1 // pred_fallthru
      _
    %356 = vsyncpa [#allocation4], 1
    %357 = vsyncpa [#allocation5], 1

</llo_original>
